<compile_context>
chip_gen: v6e
topology: v6e:2x2x1
jax: 0.10.0
libtpu: 0.0.40
codegen_flags: <defaults>
</compile_context>

<pallas_src>
import jax
import jax.numpy as jnp
from jax.experimental import pallas as pl
from jax.experimental.pallas import tpu as pltpu

D_IN, D_HID, D_OUT = 512, 256, 7
D_OUT_PAD = 128   # lane-dense padded output width (multiple of 128)
TB = 256          # batch tile: multiple of 256 keeps MXU M-cadence full on v6e/v7x


def regressor_kernel(x_ref, w1_ref, b1_ref, w2_ref, b2_ref, o_ref):
    # fc_d_1 + ReLU: bf16 operands, f32 accumulation on the MXU.
    h = jnp.dot(x_ref[...], w1_ref[...], preferred_element_type=jnp.float32)
    h = jnp.maximum(h + b1_ref[...], 0.0)
    # fc_d_2 (padded to 128 lanes) + tanh; bias add / tanh in f32.
    y = jnp.dot(h.astype(jnp.bfloat16), w2_ref[...],
                preferred_element_type=jnp.float32)
    # tanh already lands in [-1, 1] in f32, so the PyTorch clamp is a no-op.
    o_ref[...] = jnp.tanh(y + b2_ref[...]).astype(o_ref.dtype)


@jax.jit
def regressor_forward(x, w1, b1, w2, b2):
    """x: (B, 512) f32; w1: (512, 256); b1: (1, 256); w2: (256, 7); b2: (1, 7)."""
    B = x.shape[0]
    nb = pl.cdiv(B, TB)
    B_pad = nb * TB

    # bf16 at the boundary (DMA-bound kernel); zero-pad batch to a tile multiple.
    x_p = jnp.zeros((B_pad, D_IN), jnp.bfloat16).at[:B].set(x.astype(jnp.bfloat16))
    w1_b = w1.astype(jnp.bfloat16)
    # Pad the 7-wide layer to 128 lanes so w2/out are lane-dense.
    w2_b = jnp.zeros((D_HID, D_OUT_PAD), jnp.bfloat16).at[:, :D_OUT].set(
        w2.astype(jnp.bfloat16))
    b2_p = jnp.zeros((1, D_OUT_PAD), jnp.float32).at[:, :D_OUT].set(b2)

    out = pl.pallas_call(
        regressor_kernel,
        out_shape=jax.ShapeDtypeStruct((B_pad, D_OUT_PAD), jnp.float32),
        grid=(nb,),
        in_specs=[
            pl.BlockSpec((TB, D_IN), lambda i: (i, 0)),          # x: streamed per tile
            pl.BlockSpec((D_IN, D_HID), lambda i: (0, 0)),       # w1: VMEM-resident
            pl.BlockSpec((1, D_HID), lambda i: (0, 0)),          # b1: VMEM-resident
            pl.BlockSpec((D_HID, D_OUT_PAD), lambda i: (0, 0)),  # w2 (padded), resident
            pl.BlockSpec((1, D_OUT_PAD), lambda i: (0, 0)),      # b2 (padded), resident
        ],
        out_specs=pl.BlockSpec((TB, D_OUT_PAD), lambda i: (i, 0)),
        compiler_params=pltpu.CompilerParams(
            dimension_semantics=("parallel",)),
    )(x_p, w1_b, b1, w2_b, b2_p)

    return out[:B, :D_OUT]


def init_params(key):
    """Deterministic init matching nn.Linear's U(-1/sqrt(fan_in), 1/sqrt(fan_in))."""
    k1, k2, k3, k4 = jax.random.split(key, 4)
    bound1 = 1.0 / jnp.sqrt(D_IN)
    bound2 = 1.0 / jnp.sqrt(D_HID)
    w1 = jax.random.uniform(k1, (D_IN, D_HID), jnp.float32, -bound1, bound1)
    b1 = jax.random.uniform(k2, (1, D_HID), jnp.float32, -bound1, bound1)
    w2 = jax.random.uniform(k3, (D_HID, D_OUT), jnp.float32, -bound2, bound2)
    b2 = jax.random.uniform(k4, (1, D_OUT), jnp.float32, -bound2, bound2)
    return w1, b1, w2, b2


def reference_forward_f32(x, w1, b1, w2, b2):
    h = jnp.maximum(x @ w1 + b1, 0.0)
    return jnp.clip(jnp.tanh(h @ w2 + b2), -1.0, 1.0)


def reference_forward_bf16(x, w1, b1, w2, b2):
    # Emulates the kernel's bf16-in / f32-accumulate numerics for a tight check.
    h = jnp.dot(x.astype(jnp.bfloat16), w1.astype(jnp.bfloat16),
                preferred_element_type=jnp.float32) + b1
    h = jnp.maximum(h, 0.0)
    y = jnp.dot(h.astype(jnp.bfloat16), w2.astype(jnp.bfloat16),
                preferred_element_type=jnp.float32) + b2
    return jnp.tanh(y)


if __name__ == "__main__":
    key = jax.random.PRNGKey(0)
    k_x, k_p = jax.random.split(key)

    B = 8  # small batch
    h_t = jax.random.normal(k_x, (B, D_IN), jnp.float32)
    w1, b1, w2, b2 = init_params(k_p)

    out = regressor_forward(h_t, w1, b1, w2, b2)
    out = jax.block_until_ready(out)

    assert out.shape == (B, D_OUT)
    # Tight check vs. a reference using the same bf16-in/f32-acc numerics.
    ref_bf16 = reference_forward_bf16(h_t, w1, b1, w2, b2)
    assert jnp.allclose(out, ref_bf16, atol=1e-3, rtol=1e-3)
    # Sanity check vs. the pure-f32 PyTorch-equivalent reference.
    ref_f32 = reference_forward_f32(h_t, w1, b1, w2, b2)
    assert jnp.allclose(out, ref_f32, atol=5e-2, rtol=5e-2)

    print("KERNEL_OK")
</pallas_src>

<mosaic_0001>
module attributes {stable_mosaic.version = 11 : i64} {
  func.func @regressor_kernel(%arg0: i32, %arg1: memref<256x512xbf16, #tpu.memory_space<vmem>>, %arg2: memref<512x256xbf16, #tpu.memory_space<vmem>>, %arg3: memref<1x256xf32, #tpu.memory_space<vmem>>, %arg4: memref<256x128xbf16, #tpu.memory_space<vmem>>, %arg5: memref<1x128xf32, #tpu.memory_space<vmem>>, %arg6: memref<256x128xf32, #tpu.memory_space<vmem>>) attributes {dimension_semantics = [#tpu.dimension_semantics<parallel>], iteration_bounds = array<i64: 1>, scalar_prefetch = 0 : i64, scratch_operands = 0 : i64, tpu.core_type = #tpu.core_type<tc>, window_params = [{transform_indices = @transform_0, window_bounds = array<i64: 256, 512>}, {pipeline_mode = #tpu.pipeline_mode<synchronous>, transform_indices = @transform_1, window_bounds = array<i64: 512, 256>}, {pipeline_mode = #tpu.pipeline_mode<synchronous>, transform_indices = @transform_2, window_bounds = array<i64: 1, 256>}, {pipeline_mode = #tpu.pipeline_mode<synchronous>, transform_indices = @transform_3, window_bounds = array<i64: 256, 128>}, {pipeline_mode = #tpu.pipeline_mode<synchronous>, transform_indices = @transform_4, window_bounds = array<i64: 1, 128>}, {transform_indices = @transform_5, window_bounds = array<i64: 256, 128>}]} {
    %c0 = arith.constant 0 : index
    %c0_0 = arith.constant 0 : index
    %0 = vector.load %arg1[%c0, %c0_0] : memref<256x512xbf16, #tpu.memory_space<vmem>>, vector<256x512xbf16>
    %c0_1 = arith.constant 0 : index
    %c0_2 = arith.constant 0 : index
    %1 = vector.load %arg2[%c0_1, %c0_2] : memref<512x256xbf16, #tpu.memory_space<vmem>>, vector<512x256xbf16>
    %cst = arith.constant dense<0.000000e+00> : vector<256x256xf32>
    %2 = tpu.matmul %0, %1, %cst {dimension_numbers = #tpu.dot_dimension_numbers<[1], [0], [0], [1], [0, 0, 1, 1], [], []>} : vector<256x512xbf16>, vector<512x256xbf16>, vector<256x256xf32> -> vector<256x256xf32>
    %c0_3 = arith.constant 0 : index
    %c0_4 = arith.constant 0 : index
    %3 = vector.load %arg3[%c0_3, %c0_4] : memref<1x256xf32, #tpu.memory_space<vmem>>, vector<1x256xf32>
    %4 = vector.broadcast %3 : vector<1x256xf32> to vector<256x256xf32>
    %5 = arith.addf %2, %4 : vector<256x256xf32>
    %cst_5 = arith.constant 0.000000e+00 : f32
    %6 = vector.broadcast %cst_5 : f32 to vector<256x256xf32>
    %7 = arith.maximumf %5, %6 : vector<256x256xf32>
    %8 = arith.truncf %7 : vector<256x256xf32> to vector<256x256xbf16>
    %c0_6 = arith.constant 0 : index
    %c0_7 = arith.constant 0 : index
    %9 = vector.load %arg4[%c0_6, %c0_7] : memref<256x128xbf16, #tpu.memory_space<vmem>>, vector<256x128xbf16>
    %cst_8 = arith.constant dense<0.000000e+00> : vector<256x128xf32>
    %10 = tpu.matmul %8, %9, %cst_8 {dimension_numbers = #tpu.dot_dimension_numbers<[1], [0], [0], [1], [0, 0, 1, 1], [], []>} : vector<256x256xbf16>, vector<256x128xbf16>, vector<256x128xf32> -> vector<256x128xf32>
    %c0_9 = arith.constant 0 : index
    %c0_10 = arith.constant 0 : index
    %11 = vector.load %arg5[%c0_9, %c0_10] : memref<1x128xf32, #tpu.memory_space<vmem>>, vector<1x128xf32>
    %12 = vector.broadcast %11 : vector<1x128xf32> to vector<256x128xf32>
    %13 = arith.addf %10, %12 : vector<256x128xf32>
    %14 = math.tanh %13 : vector<256x128xf32>
    %c0_11 = arith.constant 0 : index
    %c0_12 = arith.constant 0 : index
    %15 = vector.load %arg6[%c0_11, %c0_12] : memref<256x128xf32, #tpu.memory_space<vmem>>, vector<256x128xf32>
    tpu.vector_store %arg6[%c0_11, %c0_12], %14 {strides = array<i32>} : memref<256x128xf32, #tpu.memory_space<vmem>>, vector<256x128xf32>,
    return
  }
  func.func @transform_0(%arg0: i32) -> (i32, i32) {
    %c0_i32 = arith.constant 0 : i32
    %c0_i32_0 = arith.constant 0 : i32
    return %arg0, %c0_i32 : i32, i32
  }
  func.func @transform_1(%arg0: i32) -> (i32, i32) {
    %c0_i32 = arith.constant 0 : i32
    %c0_i32_0 = arith.constant 0 : i32
    %c0_i32_1 = arith.constant 0 : i32
    return %c0_i32, %c0_i32_0 : i32, i32
  }
  func.func @transform_2(%arg0: i32) -> (i32, i32) {
    %c0_i32 = arith.constant 0 : i32
    %c0_i32_0 = arith.constant 0 : i32
    %c0_i32_1 = arith.constant 0 : i32
    return %c0_i32, %c0_i32_0 : i32, i32
  }
  func.func @transform_3(%arg0: i32) -> (i32, i32) {
    %c0_i32 = arith.constant 0 : i32
    %c0_i32_0 = arith.constant 0 : i32
    %c0_i32_1 = arith.constant 0 : i32
    return %c0_i32, %c0_i32_0 : i32, i32
  }
  func.func @transform_4(%arg0: i32) -> (i32, i32) {
    %c0_i32 = arith.constant 0 : i32
    %c0_i32_0 = arith.constant 0 : i32
    %c0_i32_1 = arith.constant 0 : i32
    return %c0_i32, %c0_i32_0 : i32, i32
  }
  func.func @transform_5(%arg0: i32) -> (i32, i32) {
    %c0_i32 = arith.constant 0 : i32
    %c0_i32_0 = arith.constant 0 : i32
    return %arg0, %c0_i32 : i32, i32
  }
}

</mosaic_0001>

<llo_original>
// kernel: regressor_forward.1
$region0: #{regressor_forward.1}
  #allocation0 [shape = 'u32[]', space=smem, size = 0x4, offset = 0x4, fixed_abs, tag = 'smem constant byte address 0x4 - core index']
  #allocation1 [shape = 'u32[144,128]{1,0:T(1,128)}', space=vmem, size = 0x12000, scoped, tag = 'internal scratch']
  %s0 = inlined_call_operand.vmem [shape: bf16[256,512], index: 0, kind: input, shape index: {}]
  %s1 = inlined_call_operand.vmem [shape: bf16[512,256], index: 1, kind: input, shape index: {}]
  %s2 = inlined_call_operand.vmem [shape: f32[1,256], index: 2, kind: input, shape index: {}]
  %s3 = inlined_call_operand.vmem [shape: bf16[256,128], index: 3, kind: input, shape index: {}]
  %s4 = inlined_call_operand.vmem [shape: f32[1,128], index: 4, kind: input, shape index: {}]
  %s5 = inlined_call_operand.vmem [shape: f32[256,128], index: 5, kind: output, shape index: {}]
  %s6 = sld [smem:[#allocation0]]
  $region30: #{regressor_forward.1} parent=0
    _
  %s8 = ssub.s32 1, %s6
  %s9 = scalar_select 0, %s8, %s6
  // Predicated region
  $region2: #{regressor_forward.1} parent=0 // pred_check
    _
  $region3: #{regressor_forward.1} parent=0 // pred_check_branch
    %11 = sbr.rel (0) target = $region5
  $region4: #{regressor_forward.1} parent=0 // pred_region
    _
  $region5: #{regressor_forward.1} parent=0 // pred_fallthru
    _
  // Predicated region
  $region6: #{regressor_forward.1} parent=0 // pred_check
    _
  $region7: #{regressor_forward.1} parent=0 // pred_check_branch
    %13 = sbr.rel (0) target = $region9
  $region8: #{regressor_forward.1} parent=0 // pred_region
    _
  $region9: #{regressor_forward.1} parent=0 // pred_fallthru
    _
  // Predicated region
  $region10: #{regressor_forward.1} parent=0 // pred_check
    _
  $region11: #{regressor_forward.1} parent=0 // pred_check_branch
    %15 = sbr.rel (0) target = $region13
  $region12: #{regressor_forward.1} parent=0 // pred_region
    _
  $region13: #{regressor_forward.1} parent=0 // pred_fallthru
    _
  // Predicated region
  $region14: #{regressor_forward.1} parent=0 // pred_check
    _
  $region15: #{regressor_forward.1} parent=0 // pred_check_branch
    %17 = sbr.rel (0) target = $region17
  $region16: #{regressor_forward.1} parent=0 // pred_region
    _
  $region17: #{regressor_forward.1} parent=0 // pred_fallthru
    _
  // Predicated region
  $region18: #{regressor_forward.1} parent=0 // pred_check
    _
  $region19: #{regressor_forward.1} parent=0 // pred_check_branch
    %19 = sbr.rel (0) target = $region21
  $region20: #{regressor_forward.1} parent=0 // pred_region
    _
  $region21: #{regressor_forward.1} parent=0 // pred_fallthru
    _
  %v21 = vld [vmem:[%s0] sm:$0xff]
  %v22 = vld [vmem:[%s0 + $0x8] sm:$0xff]
  %v23 = vld [vmem:[%s0 + $0x10] sm:$0xff]
  %v24 = vld [vmem:[%s0 + $0x18] sm:$0xff]
  %v25 = vld [vmem:[%s0 + $0x20] sm:$0xff]
  %v26 = vld [vmem:[%s0 + $0x28] sm:$0xff]
  %v27 = vld [vmem:[%s0 + $0x30] sm:$0xff]
  %v28 = vld [vmem:[%s0 + $0x38] sm:$0xff]
  %v29 = vld [vmem:[%s0 + $0x40] sm:$0xff]
  %v30 = vld [vmem:[%s0 + $0x48] sm:$0xff]
  %v31 = vld [vmem:[%s0 + $0x50] sm:$0xff]
  %v32 = vld [vmem:[%s0 + $0x58] sm:$0xff]
  %v33 = vld [vmem:[%s0 + $0x60] sm:$0xff]
  %v34 = vld [vmem:[%s0 + $0x68] sm:$0xff]
  %v35 = vld [vmem:[%s0 + $0x70] sm:$0xff]
  %v36 = vld [vmem:[%s0 + $0x78] sm:$0xff]
  %v37 = vld [vmem:[%s0 + $0x80] sm:$0xff]
  %v38 = vld [vmem:[%s0 + $0x88] sm:$0xff]
  %v39 = vld [vmem:[%s0 + $0x90] sm:$0xff]
  %v40 = vld [vmem:[%s0 + $0x98] sm:$0xff]
  %v41 = vld [vmem:[%s0 + $0xa0] sm:$0xff]
  %v42 = vld [vmem:[%s0 + $0xa8] sm:$0xff]
  %v43 = vld [vmem:[%s0 + $0xb0] sm:$0xff]
  %v44 = vld [vmem:[%s0 + $0xb8] sm:$0xff]
  %v45 = vld [vmem:[%s0 + $0xc0] sm:$0xff]
  %v46 = vld [vmem:[%s0 + $0xc8] sm:$0xff]
  %v47 = vld [vmem:[%s0 + $0xd0] sm:$0xff]
  %v48 = vld [vmem:[%s0 + $0xd8] sm:$0xff]
  %v49 = vld [vmem:[%s0 + $0xe0] sm:$0xff]
  %v50 = vld [vmem:[%s0 + $0xe8] sm:$0xff]
  %v51 = vld [vmem:[%s0 + $0xf0] sm:$0xff]
  %v52 = vld [vmem:[%s0 + $0xf8] sm:$0xff]
  %v53 = vld [vmem:[%s0 + $0x100] sm:$0xff]
  %v54 = vld [vmem:[%s0 + $0x108] sm:$0xff]
  %v55 = vld [vmem:[%s0 + $0x110] sm:$0xff]
  %v56 = vld [vmem:[%s0 + $0x118] sm:$0xff]
  %v57 = vld [vmem:[%s0 + $0x120] sm:$0xff]
  %v58 = vld [vmem:[%s0 + $0x128] sm:$0xff]
  %v59 = vld [vmem:[%s0 + $0x130] sm:$0xff]
  %v60 = vld [vmem:[%s0 + $0x138] sm:$0xff]
  %v61 = vld [vmem:[%s0 + $0x140] sm:$0xff]
  %v62 = vld [vmem:[%s0 + $0x148] sm:$0xff]
  %v63 = vld [vmem:[%s0 + $0x150] sm:$0xff]
  %v64 = vld [vmem:[%s0 + $0x158] sm:$0xff]
  %v65 = vld [vmem:[%s0 + $0x160] sm:$0xff]
  %v66 = vld [vmem:[%s0 + $0x168] sm:$0xff]
  %v67 = vld [vmem:[%s0 + $0x170] sm:$0xff]
  %v68 = vld [vmem:[%s0 + $0x178] sm:$0xff]
  %v69 = vld [vmem:[%s0 + $0x180] sm:$0xff]
  %v70 = vld [vmem:[%s0 + $0x188] sm:$0xff]
  %v71 = vld [vmem:[%s0 + $0x190] sm:$0xff]
  %v72 = vld [vmem:[%s0 + $0x198] sm:$0xff]
  %v73 = vld [vmem:[%s0 + $0x1a0] sm:$0xff]
  %v74 = vld [vmem:[%s0 + $0x1a8] sm:$0xff]
  %v75 = vld [vmem:[%s0 + $0x1b0] sm:$0xff]
  %v76 = vld [vmem:[%s0 + $0x1b8] sm:$0xff]
  %v77 = vld [vmem:[%s0 + $0x1c0] sm:$0xff]
  %v78 = vld [vmem:[%s0 + $0x1c8] sm:$0xff]
  %v79 = vld [vmem:[%s0 + $0x1d0] sm:$0xff]
  %v80 = vld [vmem:[%s0 + $0x1d8] sm:$0xff]
  %v81 = vld [vmem:[%s0 + $0x1e0] sm:$0xff]
  %v82 = vld [vmem:[%s0 + $0x1e8] sm:$0xff]
  %v83 = vld [vmem:[%s0 + $0x1f0] sm:$0xff]
  %v84 = vld [vmem:[%s0 + $0x1f8] sm:$0xff]
  %v85 = vld [vmem:[%s1] sm:$0xff]
  %v86 = vld [vmem:[%s1 + $0x8] sm:$0xff]
  %v87 = vld [vmem:[%s1 + $0x10] sm:$0xff]
  %v88 = vld [vmem:[%s1 + $0x18] sm:$0xff]
  %v89 = vld [vmem:[%s1 + $0x20] sm:$0xff]
  %v90 = vld [vmem:[%s1 + $0x28] sm:$0xff]
  %v91 = vld [vmem:[%s1 + $0x30] sm:$0xff]
  %v92 = vld [vmem:[%s1 + $0x38] sm:$0xff]
  %v93 = vld [vmem:[%s1 + $0x40] sm:$0xff]
  %v94 = vld [vmem:[%s1 + $0x48] sm:$0xff]
  %v95 = vld [vmem:[%s1 + $0x50] sm:$0xff]
  %v96 = vld [vmem:[%s1 + $0x58] sm:$0xff]
  %v97 = vld [vmem:[%s1 + $0x60] sm:$0xff]
  %v98 = vld [vmem:[%s1 + $0x68] sm:$0xff]
  %v99 = vld [vmem:[%s1 + $0x70] sm:$0xff]
  %v100 = vld [vmem:[%s1 + $0x78] sm:$0xff]
  %v101 = vld [vmem:[%s1 + $0x80] sm:$0xff]
  %v102 = vld [vmem:[%s1 + $0x88] sm:$0xff]
  %v103 = vld [vmem:[%s1 + $0x90] sm:$0xff]
  %v104 = vld [vmem:[%s1 + $0x98] sm:$0xff]
  %v105 = vld [vmem:[%s1 + $0xa0] sm:$0xff]
  %v106 = vld [vmem:[%s1 + $0xa8] sm:$0xff]
  %v107 = vld [vmem:[%s1 + $0xb0] sm:$0xff]
  %v108 = vld [vmem:[%s1 + $0xb8] sm:$0xff]
  %v109 = vld [vmem:[%s1 + $0xc0] sm:$0xff]
  %v110 = vld [vmem:[%s1 + $0xc8] sm:$0xff]
  %v111 = vld [vmem:[%s1 + $0xd0] sm:$0xff]
  %v112 = vld [vmem:[%s1 + $0xd8] sm:$0xff]
  %v113 = vld [vmem:[%s1 + $0xe0] sm:$0xff]
  %v114 = vld [vmem:[%s1 + $0xe8] sm:$0xff]
  %v115 = vld [vmem:[%s1 + $0xf0] sm:$0xff]
  %v116 = vld [vmem:[%s1 + $0xf8] sm:$0xff]
  %v117 = vld [vmem:[%s1 + $0x100] sm:$0xff]
  %v118 = vld [vmem:[%s1 + $0x108] sm:$0xff]
  %v119 = vld [vmem:[%s1 + $0x110] sm:$0xff]
  %v120 = vld [vmem:[%s1 + $0x118] sm:$0xff]
  %v121 = vld [vmem:[%s1 + $0x120] sm:$0xff]
  %v122 = vld [vmem:[%s1 + $0x128] sm:$0xff]
  %v123 = vld [vmem:[%s1 + $0x130] sm:$0xff]
  %v124 = vld [vmem:[%s1 + $0x138] sm:$0xff]
  %v125 = vld [vmem:[%s1 + $0x140] sm:$0xff]
  %v126 = vld [vmem:[%s1 + $0x148] sm:$0xff]
  %v127 = vld [vmem:[%s1 + $0x150] sm:$0xff]
  %v128 = vld [vmem:[%s1 + $0x158] sm:$0xff]
  %v129 = vld [vmem:[%s1 + $0x160] sm:$0xff]
  %v130 = vld [vmem:[%s1 + $0x168] sm:$0xff]
  %v131 = vld [vmem:[%s1 + $0x170] sm:$0xff]
  %v132 = vld [vmem:[%s1 + $0x178] sm:$0xff]
  %v133 = vld [vmem:[%s1 + $0x180] sm:$0xff]
  %v134 = vld [vmem:[%s1 + $0x188] sm:$0xff]
  %v135 = vld [vmem:[%s1 + $0x190] sm:$0xff]
  %v136 = vld [vmem:[%s1 + $0x198] sm:$0xff]
  %v137 = vld [vmem:[%s1 + $0x1a0] sm:$0xff]
  %v138 = vld [vmem:[%s1 + $0x1a8] sm:$0xff]
  %v139 = vld [vmem:[%s1 + $0x1b0] sm:$0xff]
  %v140 = vld [vmem:[%s1 + $0x1b8] sm:$0xff]
  %v141 = vld [vmem:[%s1 + $0x1c0] sm:$0xff]
  %v142 = vld [vmem:[%s1 + $0x1c8] sm:$0xff]
  %v143 = vld [vmem:[%s1 + $0x1d0] sm:$0xff]
  %v144 = vld [vmem:[%s1 + $0x1d8] sm:$0xff]
  %v145 = vld [vmem:[%s1 + $0x1e0] sm:$0xff]
  %v146 = vld [vmem:[%s1 + $0x1e8] sm:$0xff]
  %v147 = vld [vmem:[%s1 + $0x1f0] sm:$0xff]
  %v148 = vld [vmem:[%s1 + $0x1f8] sm:$0xff]
  %v149 = vld [vmem:[%s2] sm:$0x3]
  %v151 = vlaneseq
  %v152 = vshrl.u32 %v151, 7
  %v153 = vsub.s32 0, %v152
  %v154 = vrot.slane %v149, %v153
  %v155 = vlaneseq
  %v156 = vshrl.u32 %v155, 7
  %v157 = vsub.s32 1, %v156
  %v158 = vrot.slane %v149, %v157
  %v225 = vunpack.c.l.b16 %v21
  %v226 = vunpack.c.h.b16 %v21
  %v227 = vunpack.c.l.b16 %v22
  %v228 = vunpack.c.h.b16 %v22
  %v229 = vunpack.c.l.b16 %v23
  %v230 = vunpack.c.h.b16 %v23
  %v231 = vunpack.c.l.b16 %v24
  %v232 = vunpack.c.h.b16 %v24
  %v233 = vunpack.c.l.b16 %v25
  %v234 = vunpack.c.h.b16 %v25
  %v235 = vunpack.c.l.b16 %v26
  %v236 = vunpack.c.h.b16 %v26
  %v237 = vunpack.c.l.b16 %v27
  %v238 = vunpack.c.h.b16 %v27
  %v239 = vunpack.c.l.b16 %v28
  %v240 = vunpack.c.h.b16 %v28
  %v241 = vunpack.c.l.b16 %v29
  %v242 = vunpack.c.h.b16 %v29
  %v243 = vunpack.c.l.b16 %v30
  %v244 = vunpack.c.h.b16 %v30
  %v245 = vunpack.c.l.b16 %v31
  %v246 = vunpack.c.h.b16 %v31
  %v247 = vunpack.c.l.b16 %v32
  %v248 = vunpack.c.h.b16 %v32
  %v249 = vunpack.c.l.b16 %v33
  %v250 = vunpack.c.h.b16 %v33
  %v251 = vunpack.c.l.b16 %v34
  %v252 = vunpack.c.h.b16 %v34
  %v253 = vunpack.c.l.b16 %v35
  %v254 = vunpack.c.h.b16 %v35
  %v255 = vunpack.c.l.b16 %v36
  %v256 = vunpack.c.h.b16 %v36
  %v257 = vunpack.c.l.b16 %v37
  %v258 = vunpack.c.h.b16 %v37
  %v259 = vunpack.c.l.b16 %v38
  %v260 = vunpack.c.h.b16 %v38
  %v261 = vunpack.c.l.b16 %v39
  %v262 = vunpack.c.h.b16 %v39
  %v263 = vunpack.c.l.b16 %v40
  %v264 = vunpack.c.h.b16 %v40
  %v265 = vunpack.c.l.b16 %v41
  %v266 = vunpack.c.h.b16 %v41
  %v267 = vunpack.c.l.b16 %v42
  %v268 = vunpack.c.h.b16 %v42
  %v269 = vunpack.c.l.b16 %v43
  %v270 = vunpack.c.h.b16 %v43
  %v271 = vunpack.c.l.b16 %v44
  %v272 = vunpack.c.h.b16 %v44
  %v273 = vunpack.c.l.b16 %v45
  %v274 = vunpack.c.h.b16 %v45
  %v275 = vunpack.c.l.b16 %v46
  %v276 = vunpack.c.h.b16 %v46
  %v277 = vunpack.c.l.b16 %v47
  %v278 = vunpack.c.h.b16 %v47
  %v279 = vunpack.c.l.b16 %v48
  %v280 = vunpack.c.h.b16 %v48
  %v281 = vunpack.c.l.b16 %v49
  %v282 = vunpack.c.h.b16 %v49
  %v283 = vunpack.c.l.b16 %v50
  %v284 = vunpack.c.h.b16 %v50
  %v285 = vunpack.c.l.b16 %v51
  %v286 = vunpack.c.h.b16 %v51
  %v287 = vunpack.c.l.b16 %v52
  %v288 = vunpack.c.h.b16 %v52
  %v289 = vunpack.c.l.b16 %v53
  %v290 = vunpack.c.h.b16 %v53
  %v291 = vunpack.c.l.b16 %v54
  %v292 = vunpack.c.h.b16 %v54
  %v293 = vunpack.c.l.b16 %v55
  %v294 = vunpack.c.h.b16 %v55
  %v295 = vunpack.c.l.b16 %v56
  %v296 = vunpack.c.h.b16 %v56
  %v297 = vunpack.c.l.b16 %v57
  %v298 = vunpack.c.h.b16 %v57
  %v299 = vunpack.c.l.b16 %v58
  %v300 = vunpack.c.h.b16 %v58
  %v301 = vunpack.c.l.b16 %v59
  %v302 = vunpack.c.h.b16 %v59
  %v303 = vunpack.c.l.b16 %v60
  %v304 = vunpack.c.h.b16 %v60
  %v305 = vunpack.c.l.b16 %v61
  %v306 = vunpack.c.h.b16 %v61
  %v307 = vunpack.c.l.b16 %v62
  %v308 = vunpack.c.h.b16 %v62
  %v309 = vunpack.c.l.b16 %v63
  %v310 = vunpack.c.h.b16 %v63
  %v311 = vunpack.c.l.b16 %v64
  %v312 = vunpack.c.h.b16 %v64
  %v313 = vunpack.c.l.b16 %v65
  %v314 = vunpack.c.h.b16 %v65
  %v315 = vunpack.c.l.b16 %v66
  %v316 = vunpack.c.h.b16 %v66
  %v317 = vunpack.c.l.b16 %v67
  %v318 = vunpack.c.h.b16 %v67
  %v319 = vunpack.c.l.b16 %v68
  %v320 = vunpack.c.h.b16 %v68
  %v321 = vunpack.c.l.b16 %v69
  %v322 = vunpack.c.h.b16 %v69
  %v323 = vunpack.c.l.b16 %v70
  %v324 = vunpack.c.h.b16 %v70
  %v325 = vunpack.c.l.b16 %v71
  %v326 = vunpack.c.h.b16 %v71
  %v327 = vunpack.c.l.b16 %v72
  %v328 = vunpack.c.h.b16 %v72
  %v329 = vunpack.c.l.b16 %v73
  %v330 = vunpack.c.h.b16 %v73
  %v331 = vunpack.c.l.b16 %v74
  %v332 = vunpack.c.h.b16 %v74
  %v333 = vunpack.c.l.b16 %v75
  %v334 = vunpack.c.h.b16 %v75
  %v335 = vunpack.c.l.b16 %v76
  %v336 = vunpack.c.h.b16 %v76
  %v337 = vunpack.c.l.b16 %v77
  %v338 = vunpack.c.h.b16 %v77
  %v339 = vunpack.c.l.b16 %v78
  %v340 = vunpack.c.h.b16 %v78
  %v341 = vunpack.c.l.b16 %v79
  %v342 = vunpack.c.h.b16 %v79
  %v343 = vunpack.c.l.b16 %v80
  %v344 = vunpack.c.h.b16 %v80
  %v345 = vunpack.c.l.b16 %v81
  %v346 = vunpack.c.h.b16 %v81
  %v347 = vunpack.c.l.b16 %v82
  %v348 = vunpack.c.h.b16 %v82
  %v349 = vunpack.c.l.b16 %v83
  %v350 = vunpack.c.h.b16 %v83
  %v351 = vunpack.c.l.b16 %v84
  %v352 = vunpack.c.h.b16 %v84
  %v353 = vpack.c.b16 %v229, %v225
  %v354 = vpack.c.b16 %v230, %v226
  %v355 = vpack.c.b16 %v231, %v227
  %v356 = vpack.c.b16 %v232, %v228
  %v357 = vpack.c.b16 %v237, %v233
  %v358 = vpack.c.b16 %v238, %v234
  %v359 = vpack.c.b16 %v239, %v235
  %v360 = vpack.c.b16 %v240, %v236
  %v361 = vpack.c.b16 %v245, %v241
  %v362 = vpack.c.b16 %v246, %v242
  %v363 = vpack.c.b16 %v247, %v243
  %v364 = vpack.c.b16 %v248, %v244
  %v365 = vpack.c.b16 %v253, %v249
  %v366 = vpack.c.b16 %v254, %v250
  %v367 = vpack.c.b16 %v255, %v251
  %v368 = vpack.c.b16 %v256, %v252
  %v369 = vpack.c.b16 %v261, %v257
  %v370 = vpack.c.b16 %v262, %v258
  %v371 = vpack.c.b16 %v263, %v259
  %v372 = vpack.c.b16 %v264, %v260
  %v373 = vpack.c.b16 %v269, %v265
  %v374 = vpack.c.b16 %v270, %v266
  %v375 = vpack.c.b16 %v271, %v267
  %v376 = vpack.c.b16 %v272, %v268
  %v377 = vpack.c.b16 %v277, %v273
  %v378 = vpack.c.b16 %v278, %v274
  %v379 = vpack.c.b16 %v279, %v275
  %v380 = vpack.c.b16 %v280, %v276
  %v381 = vpack.c.b16 %v285, %v281
  %v382 = vpack.c.b16 %v286, %v282
  %v383 = vpack.c.b16 %v287, %v283
  %v384 = vpack.c.b16 %v288, %v284
  %v385 = vpack.c.b16 %v293, %v289
  %v386 = vpack.c.b16 %v294, %v290
  %v387 = vpack.c.b16 %v295, %v291
  %v388 = vpack.c.b16 %v296, %v292
  %v389 = vpack.c.b16 %v301, %v297
  %v390 = vpack.c.b16 %v302, %v298
  %v391 = vpack.c.b16 %v303, %v299
  %v392 = vpack.c.b16 %v304, %v300
  %v393 = vpack.c.b16 %v309, %v305
  %v394 = vpack.c.b16 %v310, %v306
  %v395 = vpack.c.b16 %v311, %v307
  %v396 = vpack.c.b16 %v312, %v308
  %v397 = vpack.c.b16 %v317, %v313
  %v398 = vpack.c.b16 %v318, %v314
  %v399 = vpack.c.b16 %v319, %v315
  %v400 = vpack.c.b16 %v320, %v316
  %v401 = vpack.c.b16 %v325, %v321
  %v402 = vpack.c.b16 %v326, %v322
  %v403 = vpack.c.b16 %v327, %v323
  %v404 = vpack.c.b16 %v328, %v324
  %v405 = vpack.c.b16 %v333, %v329
  %v406 = vpack.c.b16 %v334, %v330
  %v407 = vpack.c.b16 %v335, %v331
  %v408 = vpack.c.b16 %v336, %v332
  %v409 = vpack.c.b16 %v341, %v337
  %v410 = vpack.c.b16 %v342, %v338
  %v411 = vpack.c.b16 %v343, %v339
  %v412 = vpack.c.b16 %v344, %v340
  %v413 = vpack.c.b16 %v349, %v345
  %v414 = vpack.c.b16 %v350, %v346
  %v415 = vpack.c.b16 %v351, %v347
  %v416 = vpack.c.b16 %v352, %v348
  %v545 = vunpack.c.l.b16 %v85
  %v546 = vunpack.c.h.b16 %v85
  %v547 = vunpack.c.l.b16 %v86
  %v548 = vunpack.c.h.b16 %v86
  %v549 = vunpack.c.l.b16 %v87
  %v550 = vunpack.c.h.b16 %v87
  %v551 = vunpack.c.l.b16 %v88
  %v552 = vunpack.c.h.b16 %v88
  %v553 = vunpack.c.l.b16 %v89
  %v554 = vunpack.c.h.b16 %v89
  %v555 = vunpack.c.l.b16 %v90
  %v556 = vunpack.c.h.b16 %v90
  %v557 = vunpack.c.l.b16 %v91
  %v558 = vunpack.c.h.b16 %v91
  %v559 = vunpack.c.l.b16 %v92
  %v560 = vunpack.c.h.b16 %v92
  %v561 = vunpack.c.l.b16 %v93
  %v562 = vunpack.c.h.b16 %v93
  %v563 = vunpack.c.l.b16 %v94
  %v564 = vunpack.c.h.b16 %v94
  %v565 = vunpack.c.l.b16 %v95
  %v566 = vunpack.c.h.b16 %v95
  %v567 = vunpack.c.l.b16 %v96
  %v568 = vunpack.c.h.b16 %v96
  %v569 = vunpack.c.l.b16 %v97
  %v570 = vunpack.c.h.b16 %v97
  %v571 = vunpack.c.l.b16 %v98
  %v572 = vunpack.c.h.b16 %v98
  %v573 = vunpack.c.l.b16 %v99
  %v574 = vunpack.c.h.b16 %v99
  %v575 = vunpack.c.l.b16 %v100
  %v576 = vunpack.c.h.b16 %v100
  %v577 = vunpack.c.l.b16 %v101
  %v578 = vunpack.c.h.b16 %v101
  %v579 = vunpack.c.l.b16 %v102
  %v580 = vunpack.c.h.b16 %v102
  %v581 = vunpack.c.l.b16 %v103
  %v582 = vunpack.c.h.b16 %v103
  %v583 = vunpack.c.l.b16 %v104
  %v584 = vunpack.c.h.b16 %v104
  %v585 = vunpack.c.l.b16 %v105
  %v586 = vunpack.c.h.b16 %v105
  %v587 = vunpack.c.l.b16 %v106
  %v588 = vunpack.c.h.b16 %v106
  %v589 = vunpack.c.l.b16 %v107
  %v590 = vunpack.c.h.b16 %v107
  %v591 = vunpack.c.l.b16 %v108
  %v592 = vunpack.c.h.b16 %v108
  %v593 = vunpack.c.l.b16 %v109
  %v594 = vunpack.c.h.b16 %v109
  %v595 = vunpack.c.l.b16 %v110
  %v596 = vunpack.c.h.b16 %v110
  %v597 = vunpack.c.l.b16 %v111
  %v598 = vunpack.c.h.b16 %v111
  %v599 = vunpack.c.l.b16 %v112
  %v600 = vunpack.c.h.b16 %v112
  %v601 = vunpack.c.l.b16 %v113
  %v602 = vunpack.c.h.b16 %v113
  %v603 = vunpack.c.l.b16 %v114
  %v604 = vunpack.c.h.b16 %v114
  %v605 = vunpack.c.l.b16 %v115
  %v606 = vunpack.c.h.b16 %v115
  %v607 = vunpack.c.l.b16 %v116
  %v608 = vunpack.c.h.b16 %v116
  %v609 = vunpack.c.l.b16 %v117
  %v610 = vunpack.c.h.b16 %v117
  %v611 = vunpack.c.l.b16 %v118
  %v612 = vunpack.c.h.b16 %v118
  %v613 = vunpack.c.l.b16 %v119
  %v614 = vunpack.c.h.b16 %v119
  %v615 = vunpack.c.l.b16 %v120
  %v616 = vunpack.c.h.b16 %v120
  %v617 = vunpack.c.l.b16 %v121
  %v618 = vunpack.c.h.b16 %v121
  %v619 = vunpack.c.l.b16 %v122
  %v620 = vunpack.c.h.b16 %v122
  %v621 = vunpack.c.l.b16 %v123
  %v622 = vunpack.c.h.b16 %v123
  %v623 = vunpack.c.l.b16 %v124
  %v624 = vunpack.c.h.b16 %v124
  %v625 = vunpack.c.l.b16 %v125
  %v626 = vunpack.c.h.b16 %v125
  %v627 = vunpack.c.l.b16 %v126
  %v628 = vunpack.c.h.b16 %v126
  %v629 = vunpack.c.l.b16 %v127
  %v630 = vunpack.c.h.b16 %v127
  %v631 = vunpack.c.l.b16 %v128
  %v632 = vunpack.c.h.b16 %v128
  %v633 = vunpack.c.l.b16 %v129
  %v634 = vunpack.c.h.b16 %v129
  %v635 = vunpack.c.l.b16 %v130
  %v636 = vunpack.c.h.b16 %v130
  %v637 = vunpack.c.l.b16 %v131
  %v638 = vunpack.c.h.b16 %v131
  %v639 = vunpack.c.l.b16 %v132
  %v640 = vunpack.c.h.b16 %v132
  %v641 = vunpack.c.l.b16 %v133
  %v642 = vunpack.c.h.b16 %v133
  %v643 = vunpack.c.l.b16 %v134
  %v644 = vunpack.c.h.b16 %v134
  %v645 = vunpack.c.l.b16 %v135
  %v646 = vunpack.c.h.b16 %v135
  %v647 = vunpack.c.l.b16 %v136
  %v648 = vunpack.c.h.b16 %v136
  %v649 = vunpack.c.l.b16 %v137
  %v650 = vunpack.c.h.b16 %v137
  %v651 = vunpack.c.l.b16 %v138
  %v652 = vunpack.c.h.b16 %v138
  %v653 = vunpack.c.l.b16 %v139
  %v654 = vunpack.c.h.b16 %v139
  %v655 = vunpack.c.l.b16 %v140
  %v656 = vunpack.c.h.b16 %v140
  %v657 = vunpack.c.l.b16 %v141
  %v658 = vunpack.c.h.b16 %v141
  %v659 = vunpack.c.l.b16 %v142
  %v660 = vunpack.c.h.b16 %v142
  %v661 = vunpack.c.l.b16 %v143
  %v662 = vunpack.c.h.b16 %v143
  %v663 = vunpack.c.l.b16 %v144
  %v664 = vunpack.c.h.b16 %v144
  %v665 = vunpack.c.l.b16 %v145
  %v666 = vunpack.c.h.b16 %v145
  %v667 = vunpack.c.l.b16 %v146
  %v668 = vunpack.c.h.b16 %v146
  %v669 = vunpack.c.l.b16 %v147
  %v670 = vunpack.c.h.b16 %v147
  %v671 = vunpack.c.l.b16 %v148
  %v672 = vunpack.c.h.b16 %v148
  %v673 = vpack.c.b16 %v547, %v545
  %v674 = vpack.c.b16 %v548, %v546
  %v675 = vpack.c.b16 %v551, %v549
  %v676 = vpack.c.b16 %v552, %v550
  %v677 = vpack.c.b16 %v555, %v553
  %v678 = vpack.c.b16 %v556, %v554
  %v679 = vpack.c.b16 %v559, %v557
  %v680 = vpack.c.b16 %v560, %v558
  %v681 = vpack.c.b16 %v563, %v561
  %v682 = vpack.c.b16 %v564, %v562
  %v683 = vpack.c.b16 %v567, %v565
  %v684 = vpack.c.b16 %v568, %v566
  %v685 = vpack.c.b16 %v571, %v569
  %v686 = vpack.c.b16 %v572, %v570
  %v687 = vpack.c.b16 %v575, %v573
  %v688 = vpack.c.b16 %v576, %v574
  %v689 = vpack.c.b16 %v579, %v577
  %v690 = vpack.c.b16 %v580, %v578
  %v691 = vpack.c.b16 %v583, %v581
  %v692 = vpack.c.b16 %v584, %v582
  %v693 = vpack.c.b16 %v587, %v585
  %v694 = vpack.c.b16 %v588, %v586
  %v695 = vpack.c.b16 %v591, %v589
  %v696 = vpack.c.b16 %v592, %v590
  %v697 = vpack.c.b16 %v595, %v593
  %v698 = vpack.c.b16 %v596, %v594
  %v699 = vpack.c.b16 %v599, %v597
  %v700 = vpack.c.b16 %v600, %v598
  %v701 = vpack.c.b16 %v603, %v601
  %v702 = vpack.c.b16 %v604, %v602
  %v703 = vpack.c.b16 %v607, %v605
  %v704 = vpack.c.b16 %v608, %v606
  %v705 = vpack.c.b16 %v611, %v609
  %v706 = vpack.c.b16 %v612, %v610
  %v707 = vpack.c.b16 %v615, %v613
  %v708 = vpack.c.b16 %v616, %v614
  %v709 = vpack.c.b16 %v619, %v617
  %v710 = vpack.c.b16 %v620, %v618
  %v711 = vpack.c.b16 %v623, %v621
  %v712 = vpack.c.b16 %v624, %v622
  %v713 = vpack.c.b16 %v627, %v625
  %v714 = vpack.c.b16 %v628, %v626
  %v715 = vpack.c.b16 %v631, %v629
  %v716 = vpack.c.b16 %v632, %v630
  %v717 = vpack.c.b16 %v635, %v633
  %v718 = vpack.c.b16 %v636, %v634
  %v719 = vpack.c.b16 %v639, %v637
  %v720 = vpack.c.b16 %v640, %v638
  %v721 = vpack.c.b16 %v643, %v641
  %v722 = vpack.c.b16 %v644, %v642
  %v723 = vpack.c.b16 %v647, %v645
  %v724 = vpack.c.b16 %v648, %v646
  %v725 = vpack.c.b16 %v651, %v649
  %v726 = vpack.c.b16 %v652, %v650
  %v727 = vpack.c.b16 %v655, %v653
  %v728 = vpack.c.b16 %v656, %v654
  %v729 = vpack.c.b16 %v659, %v657
  %v730 = vpack.c.b16 %v660, %v658
  %v731 = vpack.c.b16 %v663, %v661
  %v732 = vpack.c.b16 %v664, %v662
  %v733 = vpack.c.b16 %v667, %v665
  %v734 = vpack.c.b16 %v668, %v666
  %v735 = vpack.c.b16 %v671, %v669
  %v736 = vpack.c.b16 %v672, %v670
  %801 = vmatprep.subr.bf16.mxu0 %v688
  %802 = vmatpush1.bf16.msra.mxu0 %v687
  %803 = vmatprep.subr.bf16.mxu0 %v686
  %804 = vmatpush1.bf16.msra.mxu0 %v685
  %805 = vmatprep.subr.bf16.mxu0 %v684
  %806 = vmatpush1.bf16.msra.mxu0 %v683
  %807 = vmatprep.subr.bf16.mxu0 %v682
  %808 = vmatpush1.bf16.msra.mxu0 %v681
  %809 = vmatprep.subr.bf16.mxu0 %v680
  %810 = vmatpush1.bf16.msra.mxu0 %v679
  %811 = vmatprep.subr.bf16.mxu0 %v678
  %812 = vmatpush1.bf16.msra.mxu0 %v677
  %813 = vmatprep.subr.bf16.mxu0 %v676
  %814 = vmatpush1.bf16.msra.mxu0 %v675
  %815 = vmatprep.subr.bf16.mxu0 %v674
  %816 = vmatpush1.bf16.msra.mxu0 %v673
  %817 = vmatprep.subr.bf16.mxu0 %v704
  %818 = vmatpush2.bf16.msra.mxu0 %v703
  %819 = vmatprep.subr.bf16.mxu0 %v702
  %820 = vmatpush2.bf16.msra.mxu0 %v701
  %821 = vmatprep.subr.bf16.mxu0 %v700
  %822 = vmatpush2.bf16.msra.mxu0 %v699
  %823 = vmatprep.subr.bf16.mxu0 %v698
  %824 = vmatpush2.bf16.msra.mxu0 %v697
  %825 = vmatprep.subr.bf16.mxu0 %v696
  %826 = vmatpush2.bf16.msra.mxu0 %v695
  %827 = vmatprep.subr.bf16.mxu0 %v694
  %828 = vmatpush2.bf16.msra.mxu0 %v693
  %829 = vmatprep.subr.bf16.mxu0 %v692
  %830 = vmatpush2.bf16.msra.mxu0 %v691
  %831 = vmatprep.subr.bf16.mxu0 %v690
  %832 = vmatpush2.bf16.msra.mxu0 %v689
  %833 = vmatprep.mubr.bf16.mxu0 %v354
  %834 = vmatmul.mubr.bf16.gmra.mxu0 %v353
  %v835 = vpop.f32.mrf.mxu0
  %v836 = vadd.f32 %v154, %v835
  %v837 = vpop.f32.mrf.mxu0
  %v838 = vadd.f32 %v158, %v837
  %v839 = vpop.f32.mrf.mxu0
  %v840 = vadd.f32 %v154, %v839
  %v841 = vpop.f32.mrf.mxu0
  %v842 = vadd.f32 %v158, %v841
  %843 = vmatprep.mubr.bf16.mxu0 %v358
  %844 = vmatmul.mubr.bf16.gmra.mxu0 %v357
  %v845 = vpop.f32.mrf.mxu0
  %v846 = vadd.f32 %v154, %v845
  %v847 = vpop.f32.mrf.mxu0
  %v848 = vadd.f32 %v158, %v847
  %v849 = vpop.f32.mrf.mxu0
  %v850 = vadd.f32 %v154, %v849
  %v851 = vpop.f32.mrf.mxu0
  %v852 = vadd.f32 %v158, %v851
  %853 = vmatprep.mubr.bf16.mxu0 %v362
  %854 = vmatmul.mubr.bf16.gmra.mxu0 %v361
  %v855 = vpop.f32.mrf.mxu0
  %v856 = vadd.f32 %v154, %v855
  %v857 = vpop.f32.mrf.mxu0
  %v858 = vadd.f32 %v158, %v857
  %v859 = vpop.f32.mrf.mxu0
  %v860 = vadd.f32 %v154, %v859
  %v861 = vpop.f32.mrf.mxu0
  %v862 = vadd.f32 %v158, %v861
  %863 = vmatprep.mubr.bf16.mxu0 %v366
  %864 = vmatmul.mubr.bf16.gmra.mxu0 %v365
  %v865 = vpop.f32.mrf.mxu0
  %v866 = vadd.f32 %v154, %v865
  %v867 = vpop.f32.mrf.mxu0
  %v868 = vadd.f32 %v158, %v867
  %v869 = vpop.f32.mrf.mxu0
  %v870 = vadd.f32 %v154, %v869
  %v871 = vpop.f32.mrf.mxu0
  %v872 = vadd.f32 %v158, %v871
  %873 = vmatprep.mubr.bf16.mxu0 %v370
  %874 = vmatmul.mubr.bf16.gmra.mxu0 %v369
  %v875 = vpop.f32.mrf.mxu0
  %v876 = vadd.f32 %v154, %v875
  %v877 = vpop.f32.mrf.mxu0
  %v878 = vadd.f32 %v158, %v877
  %v879 = vpop.f32.mrf.mxu0
  %v880 = vadd.f32 %v154, %v879
  %v881 = vpop.f32.mrf.mxu0
  %v882 = vadd.f32 %v158, %v881
  %883 = vmatprep.mubr.bf16.mxu0 %v374
  %884 = vmatmul.mubr.bf16.gmra.mxu0 %v373
  %v885 = vpop.f32.mrf.mxu0
  %v886 = vadd.f32 %v154, %v885
  %v887 = vpop.f32.mrf.mxu0
  %v888 = vadd.f32 %v158, %v887
  %v889 = vpop.f32.mrf.mxu0
  %v890 = vadd.f32 %v154, %v889
  %v891 = vpop.f32.mrf.mxu0
  %v892 = vadd.f32 %v158, %v891
  %893 = vmatprep.mubr.bf16.mxu0 %v378
  %894 = vmatmul.mubr.bf16.gmra.mxu0 %v377
  %v895 = vpop.f32.mrf.mxu0
  %v896 = vadd.f32 %v154, %v895
  %v897 = vpop.f32.mrf.mxu0
  %v898 = vadd.f32 %v158, %v897
  %v899 = vpop.f32.mrf.mxu0
  %v900 = vadd.f32 %v154, %v899
  %v901 = vpop.f32.mrf.mxu0
  %v902 = vadd.f32 %v158, %v901
  %903 = vmatprep.mubr.bf16.mxu0 %v382
  %904 = vmatmul.mubr.bf16.gmra.mxu0 %v381
  %v905 = vpop.f32.mrf.mxu0
  %v906 = vadd.f32 %v154, %v905
  %v907 = vpop.f32.mrf.mxu0
  %v908 = vadd.f32 %v158, %v907
  %v909 = vpop.f32.mrf.mxu0
  %v910 = vadd.f32 %v154, %v909
  %v911 = vpop.f32.mrf.mxu0
  %v912 = vadd.f32 %v158, %v911
  %913 = vmatprep.mubr.bf16.mxu0 %v386
  %914 = vmatmul.mubr.bf16.gmra.mxu0 %v385
  %v915 = vpop.f32.mrf.mxu0
  %v916 = vadd.f32 %v154, %v915
  %v917 = vpop.f32.mrf.mxu0
  %v918 = vadd.f32 %v158, %v917
  %v919 = vpop.f32.mrf.mxu0
  %v920 = vadd.f32 %v154, %v919
  %v921 = vpop.f32.mrf.mxu0
  %v922 = vadd.f32 %v158, %v921
  %923 = vmatprep.mubr.bf16.mxu0 %v390
  %924 = vmatmul.mubr.bf16.gmra.mxu0 %v389
  %v925 = vpop.f32.mrf.mxu0
  %v926 = vadd.f32 %v154, %v925
  %v927 = vpop.f32.mrf.mxu0
  %v928 = vadd.f32 %v158, %v927
  %v929 = vpop.f32.mrf.mxu0
  %v930 = vadd.f32 %v154, %v929
  %v931 = vpop.f32.mrf.mxu0
  %v932 = vadd.f32 %v158, %v931
  %933 = vmatprep.mubr.bf16.mxu0 %v394
  %934 = vmatmul.mubr.bf16.gmra.mxu0 %v393
  %v935 = vpop.f32.mrf.mxu0
  %v936 = vadd.f32 %v154, %v935
  %v937 = vpop.f32.mrf.mxu0
  %v938 = vadd.f32 %v158, %v937
  %v939 = vpop.f32.mrf.mxu0
  %v940 = vadd.f32 %v154, %v939
  %v941 = vpop.f32.mrf.mxu0
  %v942 = vadd.f32 %v158, %v941
  %943 = vmatprep.mubr.bf16.mxu0 %v398
  %944 = vmatmul.mubr.bf16.gmra.mxu0 %v397
  %v945 = vpop.f32.mrf.mxu0
  %v946 = vadd.f32 %v154, %v945
  %v947 = vpop.f32.mrf.mxu0
  %v948 = vadd.f32 %v158, %v947
  %v949 = vpop.f32.mrf.mxu0
  %v950 = vadd.f32 %v154, %v949
  %v951 = vpop.f32.mrf.mxu0
  %v952 = vadd.f32 %v158, %v951
  %953 = vmatprep.mubr.bf16.mxu0 %v402
  %954 = vmatmul.mubr.bf16.gmra.mxu0 %v401
  %v955 = vpop.f32.mrf.mxu0
  %v956 = vadd.f32 %v154, %v955
  %v957 = vpop.f32.mrf.mxu0
  %v958 = vadd.f32 %v158, %v957
  %v959 = vpop.f32.mrf.mxu0
  %v960 = vadd.f32 %v154, %v959
  %v961 = vpop.f32.mrf.mxu0
  %v962 = vadd.f32 %v158, %v961
  %963 = vmatprep.mubr.bf16.mxu0 %v406
  %964 = vmatmul.mubr.bf16.gmra.mxu0 %v405
  %v965 = vpop.f32.mrf.mxu0
  %v966 = vadd.f32 %v154, %v965
  %v967 = vpop.f32.mrf.mxu0
  %v968 = vadd.f32 %v158, %v967
  %v969 = vpop.f32.mrf.mxu0
  %v970 = vadd.f32 %v154, %v969
  %v971 = vpop.f32.mrf.mxu0
  %v972 = vadd.f32 %v158, %v971
  %973 = vmatprep.mubr.bf16.mxu0 %v410
  %974 = vmatmul.mubr.bf16.gmra.mxu0 %v409
  %v975 = vpop.f32.mrf.mxu0
  %v976 = vadd.f32 %v154, %v975
  %v977 = vpop.f32.mrf.mxu0
  %v978 = vadd.f32 %v158, %v977
  %v979 = vpop.f32.mrf.mxu0
  %v980 = vadd.f32 %v154, %v979
  %v981 = vpop.f32.mrf.mxu0
  %v982 = vadd.f32 %v158, %v981
  %983 = vmatprep.mubr.bf16.mxu0 %v414
  %984 = vmatmul.mubr.bf16.gmra.mxu0 %v413
  %v985 = vpop.f32.mrf.mxu0
  %v986 = vadd.f32 %v154, %v985
  %v987 = vpop.f32.mrf.mxu0
  %v988 = vadd.f32 %v158, %v987
  %v989 = vpop.f32.mrf.mxu0
  %v990 = vadd.f32 %v154, %v989
  %v991 = vpop.f32.mrf.mxu0
  %v992 = vadd.f32 %v158, %v991
  %993 = vdwg.mxu0
  %994 = vmatprep.subr.bf16.mxu0 %v720
  %995 = vmatpush1.bf16.msra.mxu0 %v719
  %996 = vmatprep.subr.bf16.mxu0 %v718
  %997 = vmatpush1.bf16.msra.mxu0 %v717
  %998 = vmatprep.subr.bf16.mxu0 %v716
  %999 = vmatpush1.bf16.msra.mxu0 %v715
  %1000 = vmatprep.subr.bf16.mxu0 %v714
  %1001 = vmatpush1.bf16.msra.mxu0 %v713
  %1002 = vmatprep.subr.bf16.mxu0 %v712
  %1003 = vmatpush1.bf16.msra.mxu0 %v711
  %1004 = vmatprep.subr.bf16.mxu0 %v710
  %1005 = vmatpush1.bf16.msra.mxu0 %v709
  %1006 = vmatprep.subr.bf16.mxu0 %v708
  %1007 = vmatpush1.bf16.msra.mxu0 %v707
  %1008 = vmatprep.subr.bf16.mxu0 %v706
  %1009 = vmatpush1.bf16.msra.mxu0 %v705
  %1010 = vmatprep.subr.bf16.mxu0 %v736
  %1011 = vmatpush2.bf16.msra.mxu0 %v735
  %1012 = vmatprep.subr.bf16.mxu0 %v734
  %1013 = vmatpush2.bf16.msra.mxu0 %v733
  %1014 = vmatprep.subr.bf16.mxu0 %v732
  %1015 = vmatpush2.bf16.msra.mxu0 %v731
  %1016 = vmatprep.subr.bf16.mxu0 %v730
  %1017 = vmatpush2.bf16.msra.mxu0 %v729
  %1018 = vmatprep.subr.bf16.mxu0 %v728
  %1019 = vmatpush2.bf16.msra.mxu0 %v727
  %1020 = vmatprep.subr.bf16.mxu0 %v726
  %1021 = vmatpush2.bf16.msra.mxu0 %v725
  %1022 = vmatprep.subr.bf16.mxu0 %v724
  %1023 = vmatpush2.bf16.msra.mxu0 %v723
  %1024 = vmatprep.subr.bf16.mxu0 %v722
  %1025 = vmatpush2.bf16.msra.mxu0 %v721
  %1026 = vmatprep.mubr.bf16.mxu0 %v356
  %1027 = vmatmul.mubr.bf16.gmra.mxu0 %v355
  %v1028 = vpop.f32.mrf.mxu0
  %v1029 = vadd.f32 %v836, %v1028
  %v1030 = vpop.f32.mrf.mxu0
  %v1031 = vadd.f32 %v838, %v1030
  %v1032 = vpop.f32.mrf.mxu0
  %v1033 = vadd.f32 %v840, %v1032
  %v1034 = vpop.f32.mrf.mxu0
  %v1035 = vadd.f32 %v842, %v1034
  %1036 = vmatprep.mubr.bf16.mxu0 %v360
  %1037 = vmatmul.mubr.bf16.gmra.mxu0 %v359
  %v1038 = vpop.f32.mrf.mxu0
  %v1039 = vadd.f32 %v846, %v1038
  %v1040 = vpop.f32.mrf.mxu0
  %v1041 = vadd.f32 %v848, %v1040
  %v1042 = vpop.f32.mrf.mxu0
  %v1043 = vadd.f32 %v850, %v1042
  %v1044 = vpop.f32.mrf.mxu0
  %v1045 = vadd.f32 %v852, %v1044
  %1046 = vmatprep.mubr.bf16.mxu0 %v364
  %1047 = vmatmul.mubr.bf16.gmra.mxu0 %v363
  %v1048 = vpop.f32.mrf.mxu0
  %v1049 = vadd.f32 %v856, %v1048
  %v1050 = vpop.f32.mrf.mxu0
  %v1051 = vadd.f32 %v858, %v1050
  %v1052 = vpop.f32.mrf.mxu0
  %v1053 = vadd.f32 %v860, %v1052
  %v1054 = vpop.f32.mrf.mxu0
  %v1055 = vadd.f32 %v862, %v1054
  %1056 = vmatprep.mubr.bf16.mxu0 %v368
  %1057 = vmatmul.mubr.bf16.gmra.mxu0 %v367
  %v1058 = vpop.f32.mrf.mxu0
  %v1059 = vadd.f32 %v866, %v1058
  %v1060 = vpop.f32.mrf.mxu0
  %v1061 = vadd.f32 %v868, %v1060
  %v1062 = vpop.f32.mrf.mxu0
  %v1063 = vadd.f32 %v870, %v1062
  %v1064 = vpop.f32.mrf.mxu0
  %v1065 = vadd.f32 %v872, %v1064
  %1066 = vmatprep.mubr.bf16.mxu0 %v372
  %1067 = vmatmul.mubr.bf16.gmra.mxu0 %v371
  %v1068 = vpop.f32.mrf.mxu0
  %v1069 = vadd.f32 %v876, %v1068
  %v1070 = vpop.f32.mrf.mxu0
  %v1071 = vadd.f32 %v878, %v1070
  %v1072 = vpop.f32.mrf.mxu0
  %v1073 = vadd.f32 %v880, %v1072
  %v1074 = vpop.f32.mrf.mxu0
  %v1075 = vadd.f32 %v882, %v1074
  %1076 = vmatprep.mubr.bf16.mxu0 %v376
  %1077 = vmatmul.mubr.bf16.gmra.mxu0 %v375
  %v1078 = vpop.f32.mrf.mxu0
  %v1079 = vadd.f32 %v886, %v1078
  %v1080 = vpop.f32.mrf.mxu0
  %v1081 = vadd.f32 %v888, %v1080
  %v1082 = vpop.f32.mrf.mxu0
  %v1083 = vadd.f32 %v890, %v1082
  %v1084 = vpop.f32.mrf.mxu0
  %v1085 = vadd.f32 %v892, %v1084
  %1086 = vmatprep.mubr.bf16.mxu0 %v380
  %1087 = vmatmul.mubr.bf16.gmra.mxu0 %v379
  %v1088 = vpop.f32.mrf.mxu0
  %v1089 = vadd.f32 %v896, %v1088
  %v1090 = vpop.f32.mrf.mxu0
  %v1091 = vadd.f32 %v898, %v1090
  %v1092 = vpop.f32.mrf.mxu0
  %v1093 = vadd.f32 %v900, %v1092
  %v1094 = vpop.f32.mrf.mxu0
  %v1095 = vadd.f32 %v902, %v1094
  %1096 = vmatprep.mubr.bf16.mxu0 %v384
  %1097 = vmatmul.mubr.bf16.gmra.mxu0 %v383
  %v1098 = vpop.f32.mrf.mxu0
  %v1099 = vadd.f32 %v906, %v1098
  %v1100 = vpop.f32.mrf.mxu0
  %v1101 = vadd.f32 %v908, %v1100
  %v1102 = vpop.f32.mrf.mxu0
  %v1103 = vadd.f32 %v910, %v1102
  %v1104 = vpop.f32.mrf.mxu0
  %v1105 = vadd.f32 %v912, %v1104
  %1106 = vmatprep.mubr.bf16.mxu0 %v388
  %1107 = vmatmul.mubr.bf16.gmra.mxu0 %v387
  %v1108 = vpop.f32.mrf.mxu0
  %v1109 = vadd.f32 %v916, %v1108
  %v1110 = vpop.f32.mrf.mxu0
  %v1111 = vadd.f32 %v918, %v1110
  %v1112 = vpop.f32.mrf.mxu0
  %v1113 = vadd.f32 %v920, %v1112
  %v1114 = vpop.f32.mrf.mxu0
  %v1115 = vadd.f32 %v922, %v1114
  %1116 = vmatprep.mubr.bf16.mxu0 %v392
  %1117 = vmatmul.mubr.bf16.gmra.mxu0 %v391
  %v1118 = vpop.f32.mrf.mxu0
  %v1119 = vadd.f32 %v926, %v1118
  %v1120 = vpop.f32.mrf.mxu0
  %v1121 = vadd.f32 %v928, %v1120
  %v1122 = vpop.f32.mrf.mxu0
  %v1123 = vadd.f32 %v930, %v1122
  %v1124 = vpop.f32.mrf.mxu0
  %v1125 = vadd.f32 %v932, %v1124
  %1126 = vmatprep.mubr.bf16.mxu0 %v396
  %1127 = vmatmul.mubr.bf16.gmra.mxu0 %v395
  %v1128 = vpop.f32.mrf.mxu0
  %v1129 = vadd.f32 %v936, %v1128
  %v1130 = vpop.f32.mrf.mxu0
  %v1131 = vadd.f32 %v938, %v1130
  %v1132 = vpop.f32.mrf.mxu0
  %v1133 = vadd.f32 %v940, %v1132
  %v1134 = vpop.f32.mrf.mxu0
  %v1135 = vadd.f32 %v942, %v1134
  %1136 = vmatprep.mubr.bf16.mxu0 %v400
  %1137 = vmatmul.mubr.bf16.gmra.mxu0 %v399
  %v1138 = vpop.f32.mrf.mxu0
  %v1139 = vadd.f32 %v946, %v1138
  %v1140 = vpop.f32.mrf.mxu0
  %v1141 = vadd.f32 %v948, %v1140
  %v1142 = vpop.f32.mrf.mxu0
  %v1143 = vadd.f32 %v950, %v1142
  %v1144 = vpop.f32.mrf.mxu0
  %v1145 = vadd.f32 %v952, %v1144
  %1146 = vmatprep.mubr.bf16.mxu0 %v404
  %1147 = vmatmul.mubr.bf16.gmra.mxu0 %v403
  %v1148 = vpop.f32.mrf.mxu0
  %v1149 = vadd.f32 %v956, %v1148
  %v1150 = vpop.f32.mrf.mxu0
  %v1151 = vadd.f32 %v958, %v1150
  %v1152 = vpop.f32.mrf.mxu0
  %v1153 = vadd.f32 %v960, %v1152
  %v1154 = vpop.f32.mrf.mxu0
  %v1155 = vadd.f32 %v962, %v1154
  %1156 = vmatprep.mubr.bf16.mxu0 %v408
  %1157 = vmatmul.mubr.bf16.gmra.mxu0 %v407
  %v1158 = vpop.f32.mrf.mxu0
  %v1159 = vadd.f32 %v966, %v1158
  %v1160 = vpop.f32.mrf.mxu0
  %v1161 = vadd.f32 %v968, %v1160
  %v1162 = vpop.f32.mrf.mxu0
  %v1163 = vadd.f32 %v970, %v1162
  %v1164 = vpop.f32.mrf.mxu0
  %v1165 = vadd.f32 %v972, %v1164
  %1166 = vmatprep.mubr.bf16.mxu0 %v412
  %1167 = vmatmul.mubr.bf16.gmra.mxu0 %v411
  %v1168 = vpop.f32.mrf.mxu0
  %v1169 = vadd.f32 %v976, %v1168
  %v1170 = vpop.f32.mrf.mxu0
  %v1171 = vadd.f32 %v978, %v1170
  %v1172 = vpop.f32.mrf.mxu0
  %v1173 = vadd.f32 %v980, %v1172
  %v1174 = vpop.f32.mrf.mxu0
  %v1175 = vadd.f32 %v982, %v1174
  %1176 = vmatprep.mubr.bf16.mxu0 %v416
  %1177 = vmatmul.mubr.bf16.gmra.mxu0 %v415
  %v1178 = vpop.f32.mrf.mxu0
  %v1179 = vadd.f32 %v986, %v1178
  %v1180 = vpop.f32.mrf.mxu0
  %v1181 = vadd.f32 %v988, %v1180
  %v1182 = vpop.f32.mrf.mxu0
  %v1183 = vadd.f32 %v990, %v1182
  %v1184 = vpop.f32.mrf.mxu0
  %v1185 = vadd.f32 %v992, %v1184
  %1186 = vdwg.mxu0
  %v1187 = vmax.f32 %v1029, 0.0
  %v1188 = vmax.f32 %v1031, 0.0
  %v1189 = vmax.f32 %v1033, 0.0
  %v1190 = vmax.f32 %v1035, 0.0
  %v1191 = vmax.f32 %v1039, 0.0
  %v1192 = vmax.f32 %v1041, 0.0
  %v1193 = vmax.f32 %v1043, 0.0
  %v1194 = vmax.f32 %v1045, 0.0
  %v1195 = vmax.f32 %v1049, 0.0
  %v1196 = vmax.f32 %v1051, 0.0
  %v1197 = vmax.f32 %v1053, 0.0
  %v1198 = vmax.f32 %v1055, 0.0
  %v1199 = vmax.f32 %v1059, 0.0
  %v1200 = vmax.f32 %v1061, 0.0
  %v1201 = vmax.f32 %v1063, 0.0
  %v1202 = vmax.f32 %v1065, 0.0
  %v1203 = vmax.f32 %v1069, 0.0
  %v1204 = vmax.f32 %v1071, 0.0
  %v1205 = vmax.f32 %v1073, 0.0
  %v1206 = vmax.f32 %v1075, 0.0
  %v1207 = vmax.f32 %v1079, 0.0
  %v1208 = vmax.f32 %v1081, 0.0
  %v1209 = vmax.f32 %v1083, 0.0
  %v1210 = vmax.f32 %v1085, 0.0
  %v1211 = vmax.f32 %v1089, 0.0
  %v1212 = vmax.f32 %v1091, 0.0
  %v1213 = vmax.f32 %v1093, 0.0
  %v1214 = vmax.f32 %v1095, 0.0
  %v1215 = vmax.f32 %v1099, 0.0
  %v1216 = vmax.f32 %v1101, 0.0
  %v1217 = vmax.f32 %v1103, 0.0
  %v1218 = vmax.f32 %v1105, 0.0
  %v1219 = vmax.f32 %v1109, 0.0
  %v1220 = vmax.f32 %v1111, 0.0
  %v1221 = vmax.f32 %v1113, 0.0
  %v1222 = vmax.f32 %v1115, 0.0
  %v1223 = vmax.f32 %v1119, 0.0
  %v1224 = vmax.f32 %v1121, 0.0
  %v1225 = vmax.f32 %v1123, 0.0
  %v1226 = vmax.f32 %v1125, 0.0
  %v1227 = vmax.f32 %v1129, 0.0
  %v1228 = vmax.f32 %v1131, 0.0
  %v1229 = vmax.f32 %v1133, 0.0
  %v1230 = vmax.f32 %v1135, 0.0
  %v1231 = vmax.f32 %v1139, 0.0
  %v1232 = vmax.f32 %v1141, 0.0
  %v1233 = vmax.f32 %v1143, 0.0
  %v1234 = vmax.f32 %v1145, 0.0
  %v1235 = vmax.f32 %v1149, 0.0
  %v1236 = vmax.f32 %v1151, 0.0
  %v1237 = vmax.f32 %v1153, 0.0
  %v1238 = vmax.f32 %v1155, 0.0
  %v1239 = vmax.f32 %v1159, 0.0
  %v1240 = vmax.f32 %v1161, 0.0
  %v1241 = vmax.f32 %v1163, 0.0
  %v1242 = vmax.f32 %v1165, 0.0
  %v1243 = vmax.f32 %v1169, 0.0
  %v1244 = vmax.f32 %v1171, 0.0
  %v1245 = vmax.f32 %v1173, 0.0
  %v1246 = vmax.f32 %v1175, 0.0
  %v1247 = vmax.f32 %v1179, 0.0
  %v1248 = vmax.f32 %v1181, 0.0
  %v1249 = vmax.f32 %v1183, 0.0
  %v1250 = vmax.f32 %v1185, 0.0
  %v1251 = vpack.c.bf16 %v1189, %v1187
  %v1252 = vpack.c.bf16 %v1190, %v1188
  %v1253 = vpack.c.bf16 %v1193, %v1191
  %v1254 = vpack.c.bf16 %v1194, %v1192
  %v1255 = vpack.c.bf16 %v1197, %v1195
  %v1256 = vpack.c.bf16 %v1198, %v1196
  %v1257 = vpack.c.bf16 %v1201, %v1199
  %v1258 = vpack.c.bf16 %v1202, %v1200
  %v1259 = vpack.c.bf16 %v1205, %v1203
  %v1260 = vpack.c.bf16 %v1206, %v1204
  %v1261 = vpack.c.bf16 %v1209, %v1207
  %v1262 = vpack.c.bf16 %v1210, %v1208
  %v1263 = vpack.c.bf16 %v1213, %v1211
  %v1264 = vpack.c.bf16 %v1214, %v1212
  %v1265 = vpack.c.bf16 %v1217, %v1215
  %v1266 = vpack.c.bf16 %v1218, %v1216
  %v1267 = vpack.c.bf16 %v1221, %v1219
  %v1268 = vpack.c.bf16 %v1222, %v1220
  %v1269 = vpack.c.bf16 %v1225, %v1223
  %v1270 = vpack.c.bf16 %v1226, %v1224
  %v1271 = vpack.c.bf16 %v1229, %v1227
  %v1272 = vpack.c.bf16 %v1230, %v1228
  %v1273 = vpack.c.bf16 %v1233, %v1231
  %v1274 = vpack.c.bf16 %v1234, %v1232
  %v1275 = vpack.c.bf16 %v1237, %v1235
  %v1276 = vpack.c.bf16 %v1238, %v1236
  %v1277 = vpack.c.bf16 %v1241, %v1239
  %v1278 = vpack.c.bf16 %v1242, %v1240
  %v1279 = vpack.c.bf16 %v1245, %v1243
  %v1280 = vpack.c.bf16 %v1246, %v1244
  %v1281 = vpack.c.bf16 %v1249, %v1247
  %v1282 = vpack.c.bf16 %v1250, %v1248
  %v1283 = vld [vmem:[%s3] sm:$0xf]
  %v1284 = vld [vmem:[%s3 + $0x4] sm:$0xf]
  %v1285 = vld [vmem:[%s3 + $0x8] sm:$0xf]
  %v1286 = vld [vmem:[%s3 + $0xc] sm:$0xf]
  %v1287 = vld [vmem:[%s3 + $0x10] sm:$0xf]
  %v1288 = vld [vmem:[%s3 + $0x14] sm:$0xf]
  %v1289 = vld [vmem:[%s3 + $0x18] sm:$0xf]
  %v1290 = vld [vmem:[%s3 + $0x1c] sm:$0xf]
  %v1291 = vld [vmem:[%s3 + $0x20] sm:$0xf]
  %v1292 = vld [vmem:[%s3 + $0x24] sm:$0xf]
  %v1293 = vld [vmem:[%s3 + $0x28] sm:$0xf]
  %v1294 = vld [vmem:[%s3 + $0x2c] sm:$0xf]
  %v1295 = vld [vmem:[%s3 + $0x30] sm:$0xf]
  %v1296 = vld [vmem:[%s3 + $0x34] sm:$0xf]
  %v1297 = vld [vmem:[%s3 + $0x38] sm:$0xf]
  %v1298 = vld [vmem:[%s3 + $0x3c] sm:$0xf]
  %v1299 = vld [vmem:[%s3 + $0x40] sm:$0xf]
  %v1300 = vld [vmem:[%s3 + $0x44] sm:$0xf]
  %v1301 = vld [vmem:[%s3 + $0x48] sm:$0xf]
  %v1302 = vld [vmem:[%s3 + $0x4c] sm:$0xf]
  %v1303 = vld [vmem:[%s3 + $0x50] sm:$0xf]
  %v1304 = vld [vmem:[%s3 + $0x54] sm:$0xf]
  %v1305 = vld [vmem:[%s3 + $0x58] sm:$0xf]
  %v1306 = vld [vmem:[%s3 + $0x5c] sm:$0xf]
  %v1307 = vld [vmem:[%s3 + $0x60] sm:$0xf]
  %v1308 = vld [vmem:[%s3 + $0x64] sm:$0xf]
  %v1309 = vld [vmem:[%s3 + $0x68] sm:$0xf]
  %v1310 = vld [vmem:[%s3 + $0x6c] sm:$0xf]
  %v1311 = vld [vmem:[%s3 + $0x70] sm:$0xf]
  %v1312 = vld [vmem:[%s3 + $0x74] sm:$0xf]
  %v1313 = vld [vmem:[%s3 + $0x78] sm:$0xf]
  %v1314 = vld [vmem:[%s3 + $0x7c] sm:$0xf]
  %v1315 = vld [vmem:[%s4] sm:$0x1]
  %v1317 = vlaneseq
  %v1318 = vshrl.u32 %v1317, 7
  %v1319 = vsub.s32 0, %v1318
  %v1320 = vrot.slane %v1315, %v1319
  %v1354 = vunpack.c.l.b16 %v1283
  %v1355 = vunpack.c.l.b16 %v1284
  %v1356 = vunpack.c.l.b16 %v1285
  %v1357 = vunpack.c.l.b16 %v1286
  %v1358 = vunpack.c.l.b16 %v1287
  %v1359 = vunpack.c.l.b16 %v1288
  %v1360 = vunpack.c.l.b16 %v1289
  %v1361 = vunpack.c.l.b16 %v1290
  %v1362 = vunpack.c.l.b16 %v1291
  %v1363 = vunpack.c.l.b16 %v1292
  %v1364 = vunpack.c.l.b16 %v1293
  %v1365 = vunpack.c.l.b16 %v1294
  %v1366 = vunpack.c.l.b16 %v1295
  %v1367 = vunpack.c.l.b16 %v1296
  %v1368 = vunpack.c.l.b16 %v1297
  %v1369 = vunpack.c.l.b16 %v1298
  %v1370 = vunpack.c.l.b16 %v1299
  %v1371 = vunpack.c.l.b16 %v1300
  %v1372 = vunpack.c.l.b16 %v1301
  %v1373 = vunpack.c.l.b16 %v1302
  %v1374 = vunpack.c.l.b16 %v1303
  %v1375 = vunpack.c.l.b16 %v1304
  %v1376 = vunpack.c.l.b16 %v1305
  %v1377 = vunpack.c.l.b16 %v1306
  %v1378 = vunpack.c.l.b16 %v1307
  %v1379 = vunpack.c.l.b16 %v1308
  %v1380 = vunpack.c.l.b16 %v1309
  %v1381 = vunpack.c.l.b16 %v1310
  %v1382 = vunpack.c.l.b16 %v1311
  %v1383 = vunpack.c.l.b16 %v1312
  %v1384 = vunpack.c.l.b16 %v1313
  %v1385 = vunpack.c.l.b16 %v1314
  %v1386 = vpack.c.b16 %v1355, %v1354
  %v1387 = vpack.c.b16 %v1357, %v1356
  %v1388 = vpack.c.b16 %v1359, %v1358
  %v1389 = vpack.c.b16 %v1361, %v1360
  %v1390 = vpack.c.b16 %v1363, %v1362
  %v1391 = vpack.c.b16 %v1365, %v1364
  %v1392 = vpack.c.b16 %v1367, %v1366
  %v1393 = vpack.c.b16 %v1369, %v1368
  %v1394 = vpack.c.b16 %v1371, %v1370
  %v1395 = vpack.c.b16 %v1373, %v1372
  %v1396 = vpack.c.b16 %v1375, %v1374
  %v1397 = vpack.c.b16 %v1377, %v1376
  %v1398 = vpack.c.b16 %v1379, %v1378
  %v1399 = vpack.c.b16 %v1381, %v1380
  %v1400 = vpack.c.b16 %v1383, %v1382
  %v1401 = vpack.c.b16 %v1385, %v1384
  %1418 = vmatprep.subr.bf16.mxu0 0
  %1419 = vmatpush1.bf16.msra.mxu0 %v1393
  %1420 = vmatprep.subr.bf16.mxu0 0
  %1421 = vmatpush1.bf16.msra.mxu0 %v1392
  %1422 = vmatprep.subr.bf16.mxu0 0
  %1423 = vmatpush1.bf16.msra.mxu0 %v1391
  %1424 = vmatprep.subr.bf16.mxu0 0
  %1425 = vmatpush1.bf16.msra.mxu0 %v1390
  %1426 = vmatprep.subr.bf16.mxu0 0
  %1427 = vmatpush1.bf16.msra.mxu0 %v1389
  %1428 = vmatprep.subr.bf16.mxu0 0
  %1429 = vmatpush1.bf16.msra.mxu0 %v1388
  %1430 = vmatprep.subr.bf16.mxu0 0
  %1431 = vmatpush1.bf16.msra.mxu0 %v1387
  %1432 = vmatprep.subr.bf16.mxu0 0
  %1433 = vmatpush1.bf16.msra.mxu0 %v1386
  %1434 = vmatprep.subr.bf16.mxu0 0
  %1435 = vmatpush2.bf16.msra.mxu0 %v1401
  %1436 = vmatprep.subr.bf16.mxu0 0
  %1437 = vmatpush2.bf16.msra.mxu0 %v1400
  %1438 = vmatprep.subr.bf16.mxu0 0
  %1439 = vmatpush2.bf16.msra.mxu0 %v1399
  %1440 = vmatprep.subr.bf16.mxu0 0
  %1441 = vmatpush2.bf16.msra.mxu0 %v1398
  %1442 = vmatprep.subr.bf16.mxu0 0
  %1443 = vmatpush2.bf16.msra.mxu0 %v1397
  %1444 = vmatprep.subr.bf16.mxu0 0
  %1445 = vmatpush2.bf16.msra.mxu0 %v1396
  %1446 = vmatprep.subr.bf16.mxu0 0
  %1447 = vmatpush2.bf16.msra.mxu0 %v1395
  %1448 = vmatprep.subr.bf16.mxu0 0
  %1449 = vmatpush2.bf16.msra.mxu0 %v1394
  %1450 = vmatprep.mubr.bf16.mxu0 %v1252
  %1451 = vmatmul.mubr.bf16.gmra.mxu0 %v1251
  %v1452 = vpop.f32.mrf.mxu0
  %v1453 = vadd.f32 %v1320, %v1452
  %v1454 = vpop.f32.mrf.mxu0
  %v1455 = vpop.f32.mrf.mxu0
  %v1456 = vadd.f32 %v1320, %v1455
  %v1457 = vpop.f32.mrf.mxu0
  %1458 = vmatprep.mubr.bf16.mxu0 %v1254
  %1459 = vmatmul.mubr.bf16.gmra.mxu0 %v1253
  %v1460 = vpop.f32.mrf.mxu0
  %v1461 = vadd.f32 %v1320, %v1460
  %v1462 = vpop.f32.mrf.mxu0
  %v1463 = vpop.f32.mrf.mxu0
  %v1464 = vadd.f32 %v1320, %v1463
  %v1465 = vpop.f32.mrf.mxu0
  %1466 = vmatprep.mubr.bf16.mxu0 %v1256
  %1467 = vmatmul.mubr.bf16.gmra.mxu0 %v1255
  %v1468 = vpop.f32.mrf.mxu0
  %v1469 = vadd.f32 %v1320, %v1468
  %v1470 = vpop.f32.mrf.mxu0
  %v1471 = vpop.f32.mrf.mxu0
  %v1472 = vadd.f32 %v1320, %v1471
  %v1473 = vpop.f32.mrf.mxu0
  %1474 = vmatprep.mubr.bf16.mxu0 %v1258
  %1475 = vmatmul.mubr.bf16.gmra.mxu0 %v1257
  %v1476 = vpop.f32.mrf.mxu0
  %v1477 = vadd.f32 %v1320, %v1476
  %v1478 = vpop.f32.mrf.mxu0
  %v1479 = vpop.f32.mrf.mxu0
  %v1480 = vadd.f32 %v1320, %v1479
  %v1481 = vpop.f32.mrf.mxu0
  %1482 = vmatprep.mubr.bf16.mxu0 %v1260
  %1483 = vmatmul.mubr.bf16.gmra.mxu0 %v1259
  %v1484 = vpop.f32.mrf.mxu0
  %v1485 = vadd.f32 %v1320, %v1484
  %v1486 = vpop.f32.mrf.mxu0
  %v1487 = vpop.f32.mrf.mxu0
  %v1488 = vadd.f32 %v1320, %v1487
  %v1489 = vpop.f32.mrf.mxu0
  %1490 = vmatprep.mubr.bf16.mxu0 %v1262
  %1491 = vmatmul.mubr.bf16.gmra.mxu0 %v1261
  %v1492 = vpop.f32.mrf.mxu0
  %v1493 = vadd.f32 %v1320, %v1492
  %v1494 = vpop.f32.mrf.mxu0
  %v1495 = vpop.f32.mrf.mxu0
  %v1496 = vadd.f32 %v1320, %v1495
  %v1497 = vpop.f32.mrf.mxu0
  %1498 = vmatprep.mubr.bf16.mxu0 %v1264
  %1499 = vmatmul.mubr.bf16.gmra.mxu0 %v1263
  %v1500 = vpop.f32.mrf.mxu0
  %v1501 = vadd.f32 %v1320, %v1500
  %v1502 = vpop.f32.mrf.mxu0
  %v1503 = vpop.f32.mrf.mxu0
  %v1504 = vadd.f32 %v1320, %v1503
  %v1505 = vpop.f32.mrf.mxu0
  %1506 = vmatprep.mubr.bf16.mxu0 %v1266
  %1507 = vmatmul.mubr.bf16.gmra.mxu0 %v1265
  %v1508 = vpop.f32.mrf.mxu0
  %v1509 = vadd.f32 %v1320, %v1508
  %v1510 = vpop.f32.mrf.mxu0
  %v1511 = vpop.f32.mrf.mxu0
  %v1512 = vadd.f32 %v1320, %v1511
  %v1513 = vpop.f32.mrf.mxu0
  %1514 = vmatprep.mubr.bf16.mxu0 %v1268
  %1515 = vmatmul.mubr.bf16.gmra.mxu0 %v1267
  %v1516 = vpop.f32.mrf.mxu0
  %v1517 = vadd.f32 %v1320, %v1516
  %v1518 = vpop.f32.mrf.mxu0
  %v1519 = vpop.f32.mrf.mxu0
  %v1520 = vadd.f32 %v1320, %v1519
  %v1521 = vpop.f32.mrf.mxu0
  %1522 = vmatprep.mubr.bf16.mxu0 %v1270
  %1523 = vmatmul.mubr.bf16.gmra.mxu0 %v1269
  %v1524 = vpop.f32.mrf.mxu0
  %v1525 = vadd.f32 %v1320, %v1524
  %v1526 = vpop.f32.mrf.mxu0
  %v1527 = vpop.f32.mrf.mxu0
  %v1528 = vadd.f32 %v1320, %v1527
  %v1529 = vpop.f32.mrf.mxu0
  %1530 = vmatprep.mubr.bf16.mxu0 %v1272
  %1531 = vmatmul.mubr.bf16.gmra.mxu0 %v1271
  %v1532 = vpop.f32.mrf.mxu0
  %v1533 = vadd.f32 %v1320, %v1532
  %v1534 = vpop.f32.mrf.mxu0
  %v1535 = vpop.f32.mrf.mxu0
  %v1536 = vadd.f32 %v1320, %v1535
  %v1537 = vpop.f32.mrf.mxu0
  %1538 = vmatprep.mubr.bf16.mxu0 %v1274
  %1539 = vmatmul.mubr.bf16.gmra.mxu0 %v1273
  %v1540 = vpop.f32.mrf.mxu0
  %v1541 = vadd.f32 %v1320, %v1540
  %v1542 = vpop.f32.mrf.mxu0
  %v1543 = vpop.f32.mrf.mxu0
  %v1544 = vadd.f32 %v1320, %v1543
  %v1545 = vpop.f32.mrf.mxu0
  %1546 = vmatprep.mubr.bf16.mxu0 %v1276
  %1547 = vmatmul.mubr.bf16.gmra.mxu0 %v1275
  %v1548 = vpop.f32.mrf.mxu0
  %v1549 = vadd.f32 %v1320, %v1548
  %v1550 = vpop.f32.mrf.mxu0
  %v1551 = vpop.f32.mrf.mxu0
  %v1552 = vadd.f32 %v1320, %v1551
  %v1553 = vpop.f32.mrf.mxu0
  %1554 = vmatprep.mubr.bf16.mxu0 %v1278
  %1555 = vmatmul.mubr.bf16.gmra.mxu0 %v1277
  %v1556 = vpop.f32.mrf.mxu0
  %v1557 = vadd.f32 %v1320, %v1556
  %v1558 = vpop.f32.mrf.mxu0
  %v1559 = vpop.f32.mrf.mxu0
  %v1560 = vadd.f32 %v1320, %v1559
  %v1561 = vpop.f32.mrf.mxu0
  %1562 = vmatprep.mubr.bf16.mxu0 %v1280
  %1563 = vmatmul.mubr.bf16.gmra.mxu0 %v1279
  %v1564 = vpop.f32.mrf.mxu0
  %v1565 = vadd.f32 %v1320, %v1564
  %v1566 = vpop.f32.mrf.mxu0
  %v1567 = vpop.f32.mrf.mxu0
  %v1568 = vadd.f32 %v1320, %v1567
  %v1569 = vpop.f32.mrf.mxu0
  %1570 = vmatprep.mubr.bf16.mxu0 %v1282
  %1571 = vmatmul.mubr.bf16.gmra.mxu0 %v1281
  %v1572 = vpop.f32.mrf.mxu0
  %v1573 = vadd.f32 %v1320, %v1572
  %v1574 = vpop.f32.mrf.mxu0
  %v1575 = vpop.f32.mrf.mxu0
  %v1576 = vadd.f32 %v1320, %v1575
  %v1577 = vpop.f32.mrf.mxu0
  %1578 = vdwg.mxu0
  %v1579 = vtanh.pop %v1453
  %v1580 = vtanh.pop %v1456
  %v1581 = vtanh.pop %v1461
  %v1582 = vtanh.pop %v1464
  %v1583 = vtanh.pop %v1469
  %v1584 = vtanh.pop %v1472
  %v1585 = vtanh.pop %v1477
  %v1586 = vtanh.pop %v1480
  %v1587 = vtanh.pop %v1485
  %v1588 = vtanh.pop %v1488
  %v1589 = vtanh.pop %v1493
  %v1590 = vtanh.pop %v1496
  %v1591 = vtanh.pop %v1501
  %v1592 = vtanh.pop %v1504
  %v1593 = vtanh.pop %v1509
  %v1594 = vtanh.pop %v1512
  %v1595 = vtanh.pop %v1517
  %v1596 = vtanh.pop %v1520
  %v1597 = vtanh.pop %v1525
  %v1598 = vtanh.pop %v1528
  %v1599 = vtanh.pop %v1533
  %v1600 = vtanh.pop %v1536
  %v1601 = vtanh.pop %v1541
  %v1602 = vtanh.pop %v1544
  %v1603 = vtanh.pop %v1549
  %v1604 = vtanh.pop %v1552
  %v1605 = vtanh.pop %v1557
  %v1606 = vtanh.pop %v1560
  %v1607 = vtanh.pop %v1565
  %v1608 = vtanh.pop %v1568
  %v1609 = vtanh.pop %v1573
  %v1610 = vtanh.pop %v1576
  %1611 = vst [vmem:[%s5] sm:$0xff] %v1579
  %1612 = vst [vmem:[%s5 + $0x8] sm:$0xff] %v1580
  %1613 = vst [vmem:[%s5 + $0x10] sm:$0xff] %v1581
  %1614 = vst [vmem:[%s5 + $0x18] sm:$0xff] %v1582
  %1615 = vst [vmem:[%s5 + $0x20] sm:$0xff] %v1583
  %1616 = vst [vmem:[%s5 + $0x28] sm:$0xff] %v1584
  %1617 = vst [vmem:[%s5 + $0x30] sm:$0xff] %v1585
  %1618 = vst [vmem:[%s5 + $0x38] sm:$0xff] %v1586
  %1619 = vst [vmem:[%s5 + $0x40] sm:$0xff] %v1587
  %1620 = vst [vmem:[%s5 + $0x48] sm:$0xff] %v1588
  %1621 = vst [vmem:[%s5 + $0x50] sm:$0xff] %v1589
  %1622 = vst [vmem:[%s5 + $0x58] sm:$0xff] %v1590
  %1623 = vst [vmem:[%s5 + $0x60] sm:$0xff] %v1591
  %1624 = vst [vmem:[%s5 + $0x68] sm:$0xff] %v1592
  %1625 = vst [vmem:[%s5 + $0x70] sm:$0xff] %v1593
  %1626 = vst [vmem:[%s5 + $0x78] sm:$0xff] %v1594
  %1627 = vst [vmem:[%s5 + $0x80] sm:$0xff] %v1595
  %1628 = vst [vmem:[%s5 + $0x88] sm:$0xff] %v1596
  %1629 = vst [vmem:[%s5 + $0x90] sm:$0xff] %v1597
  %1630 = vst [vmem:[%s5 + $0x98] sm:$0xff] %v1598
  %1631 = vst [vmem:[%s5 + $0xa0] sm:$0xff] %v1599
  %1632 = vst [vmem:[%s5 + $0xa8] sm:$0xff] %v1600
  %1633 = vst [vmem:[%s5 + $0xb0] sm:$0xff] %v1601
  %1634 = vst [vmem:[%s5 + $0xb8] sm:$0xff] %v1602
  %1635 = vst [vmem:[%s5 + $0xc0] sm:$0xff] %v1603
  %1636 = vst [vmem:[%s5 + $0xc8] sm:$0xff] %v1604
  %1637 = vst [vmem:[%s5 + $0xd0] sm:$0xff] %v1605
  %1638 = vst [vmem:[%s5 + $0xd8] sm:$0xff] %v1606
  %1639 = vst [vmem:[%s5 + $0xe0] sm:$0xff] %v1607
  %1640 = vst [vmem:[%s5 + $0xe8] sm:$0xff] %v1608
  %1641 = vst [vmem:[%s5 + $0xf0] sm:$0xff] %v1609
  %1642 = vst [vmem:[%s5 + $0xf8] sm:$0xff] %v1610
  // Predicated region
  $region22: #{regressor_forward.1} parent=0 // pred_check
    _
  $region23: #{regressor_forward.1} parent=0 // pred_check_branch
    %1644 = sbr.rel (0) target = $region25
  $region24: #{regressor_forward.1} parent=0 // pred_region
    _
  $region25: #{regressor_forward.1} parent=0 // pred_fallthru
    _
  // Predicated region
  $region26: #{regressor_forward.1} parent=0 // pred_check
    _
  $region27: #{regressor_forward.1} parent=0 // pred_check_branch
    %1646 = sbr.rel (0) target = $region29
  $region28: #{regressor_forward.1} parent=0 // pred_region
    _
  $region29: #{regressor_forward.1} parent=0 // pred_fallthru
    _

</llo_original>
